<compile_context>
chip_gen: v7x
topology: tpu7x:2x2x1
jax: 0.10.0
libtpu: 0.0.40
codegen_flags: <defaults>
</compile_context>

<pallas_src>
import functools

import jax
import jax.numpy as jnp
from jax import lax
from jax.experimental import pallas as pl
from jax.experimental.pallas import tpu as pltpu

EPS = 1e-12  # matches torch.nn.functional.normalize default


def _channel_attn_kernel(x_ref, pc_ref, pr_ref, o_ref, *, expan):
    E = expan
    x = x_ref[0, 0].astype(jnp.float32)                 # (d, HW)
    d, hw = x.shape
    hw_f = jnp.float32(hw)
    eps2 = jnp.float32(EPS * EPS)

    ones_row = jnp.ones((1, hw), jnp.float32)
    eye = jnp.eye(d, dtype=jnp.float32)

    # Shared per-block statistics (computed once, reused by every head).
    # q.k^T is never materialised; everything is reconstructed from G.
    G = lax.dot_general(x, x, (((1,), (1,)), ((), ())),
                        preferred_element_type=jnp.float32)       # (d, d)
    r_col = jnp.sum(x, axis=-1, keepdims=True)                    # (d, 1)
    r_row = lax.dot_general(ones_row, x, (((1,), (1,)), ((), ())),
                            preferred_element_type=jnp.float32)   # (1, d)
    g_eye = G * eye
    gdiag_col = jnp.sum(g_eye, axis=-1, keepdims=True)            # (d, 1)
    gdiag_row = jnp.sum(g_eye, axis=-2, keepdims=True)            # (1, d)

    M = jnp.zeros((d, d), jnp.float32)                  # accumulated (wf*attn)*diag(sv)
    c = jnp.zeros((d, 1), jnp.float32)                  # accumulated (wf*attn) @ bv
    for e in range(E):                                  # static unrolled loop over heads
        sq = pc_ref[0, 0 * E + e]                       # (d, 1) column-oriented params
        bq = pc_ref[0, 1 * E + e]
        wf = pc_ref[0, 2 * E + e]
        tt = pc_ref[0, 3 * E + e]                       # temperature (replicated over d)
        sk = pr_ref[0, 0 * E + e]                       # (1, d) row-oriented params
        bk = pr_ref[0, 1 * E + e]
        sv = pr_ref[0, 2 * E + e]
        bv = pr_ref[0, 3 * E + e]

        # (q.k^T) reconstructed from the gram matrix: all (d,d)-scale work.
        s = (sq * sk) * G + (sq * r_col) * bk + bq * (sk * r_row) + (hw_f * bq) * bk
        qss = sq * sq * gdiag_col + (2.0 * sq * bq) * r_col + (bq * bq) * hw_f   # (d,1)
        kss = sk * sk * gdiag_row + (2.0 * sk * bk) * r_row + (bk * bk) * hw_f   # (1,d)

        logits = s * (tt * lax.rsqrt(jnp.maximum(qss, eps2))) \
                   * lax.rsqrt(jnp.maximum(kss, eps2))
        logits = logits - jnp.max(logits, axis=-1, keepdims=True)
        p = jnp.exp(logits)
        attn = p / jnp.sum(p, axis=-1, keepdims=True)                            # (d,d)

        a = wf * attn                                   # fusion weight folded in
        M = M + a * sv                                  # v's scale folded into M
        c = c + jnp.sum(a * bv, axis=-1, keepdims=True)  # v's bias folded into c

    bf = pc_ref[0, 4 * E]                               # (d, 1) fusion conv bias
    out = jnp.dot(M, x, preferred_element_type=jnp.float32) + (c + bf)            # (d,HW)
    o_ref[0, 0] = out.astype(o_ref.dtype)


def channel_attention_pallas(x, w_qkv, b_qkv, w_fus, b_fus, t,
                             num_chans, expan_att_chans):
    """x: (B, C, H, W); w_qkv/b_qkv: (C, 3E); w_fus: (C, E); b_fus: (C,);
    t: (num_heads,) with num_heads = num_chans * E (head h = e*num_chans + cb)."""
    B, C, H, W = x.shape
    E = expan_att_chans
    assert C % num_chans == 0
    d = C // num_chans
    HW = H * W
    assert t.shape == (num_chans * E,)

    # Pure reshape (no dtype upcast): keeps the HBM x/out streams in the input dtype.
    xr = x.reshape(B, num_chans, d, HW)

    def head_params(p_cE):                 # (C, E) -> (num_chans, E, d): [cb,e,i]=p[cb*d+i,e]
        return p_cE.reshape(num_chans, d, E).transpose(0, 2, 1)

    wq, wk, wv = jnp.split(w_qkv, 3, axis=1)
    bq, bk, bv = jnp.split(b_qkv, 3, axis=1)

    # temperature per (cb, e): t[e*num_chans + cb], replicated over d.
    t_blk = jnp.broadcast_to(t.reshape(E, num_chans).T[:, :, None], (num_chans, E, d))

    # Column-oriented pack: rows [sq|bq|wf|t] (E each) + bf -> (num_chans, 4E+1, d, 1).
    packed_col = jnp.concatenate(
        [head_params(wq), head_params(bq), head_params(w_fus), t_blk,
         b_fus.reshape(num_chans, 1, d)],
        axis=1).astype(jnp.float32)[..., None]
    # Row-oriented pack: rows [sk|bk|sv|bv] (E each) -> (num_chans, 4E, 1, d).
    packed_row = jnp.concatenate(
        [head_params(wk), head_params(bk), head_params(wv), head_params(bv)],
        axis=1).astype(jnp.float32)[:, :, None, :]
    n_col = 4 * E + 1
    n_row = 4 * E

    kernel = functools.partial(_channel_attn_kernel, expan=E)

    # Rough per-step VMEM footprint: double-buffered x + out blocks plus ~2 f32
    # (d, HW) temporaries.  Raise the scoped limit only when the 32 MiB default
    # would force single-buffering (large H*W).
    est = d * HW * (4 * x.dtype.itemsize + 8) + (packed_col.size + packed_row.size) * 4
    vmem_limit = int(min(est + (8 << 20), 100 * 1024 * 1024)) if est > (28 << 20) else None

    out = pl.pallas_call(
        kernel,
        out_shape=jax.ShapeDtypeStruct((B, num_chans, d, HW), x.dtype),
        grid_spec=pltpu.PrefetchScalarGridSpec(
            num_scalar_prefetch=0,
            grid=(B, num_chans),
            in_specs=[
                # Last two block dims equal the full array dims, so any (d, HW) is legal
                # (HW a multiple of 128 keeps the output stores lane-dense).
                pl.BlockSpec((1, 1, d, HW), lambda b, cb: (b, cb, 0, 0)),       # x
                pl.BlockSpec((1, n_col, d, 1), lambda b, cb: (cb, 0, 0, 0)),    # col params
                pl.BlockSpec((1, n_row, 1, d), lambda b, cb: (cb, 0, 0, 0)),    # row params
            ],
            out_specs=pl.BlockSpec((1, 1, d, HW), lambda b, cb: (b, cb, 0, 0)),
        ),
        compiler_params=pltpu.CompilerParams(
            dimension_semantics=("parallel", "parallel"),   # both axes feed megacore
            vmem_limit_bytes=vmem_limit),
    )(xr, packed_col, packed_row)

    return out.reshape(B, C, H, W)


def channel_attention_ref(x, w_qkv, b_qkv, w_fus, b_fus, t,
                          num_chans, expan_att_chans):
    """Pure-JAX mirror of the PyTorch forward (for verification)."""
    B, C, H, W = x.shape
    E = expan_att_chans
    num_heads = num_chans * E
    d = C // num_chans
    HW = H * W

    # grouped 1x1 conv (groups=C, 1 in-ch / 3E out-ch per group)
    xw = x[:, :, None, :, :] * w_qkv.reshape(1, C, 3 * E, 1, 1) \
        + b_qkv.reshape(1, C, 3 * E, 1, 1)                      # (B, C, 3E, H, W)
    qkv = jnp.transpose(xw, (0, 2, 1, 3, 4))                    # (B, 3E, C, H, W)
    q, k, v = jnp.split(qkv, 3, axis=1)                         # (B, E, C, H, W)

    def resh(a):
        return a.reshape(B, num_heads, d, HW)

    q, k, v = resh(q), resh(k), resh(v)

    def l2n(a):
        n = jnp.sqrt(jnp.sum(a * a, axis=-1, keepdims=True))
        return a / jnp.maximum(n, EPS)

    q, k = l2n(q), l2n(k)
    attn = jnp.einsum('bhid,bhjd->bhij', q, k) * t.reshape(1, num_heads, 1, 1)
    attn = jax.nn.softmax(attn, axis=-1)
    y = jnp.einsum('bhij,bhjd->bhid', attn, v)                  # (B, nh, d, HW)

    y = y.reshape(B, E, C, H, W)
    y = jnp.transpose(y, (0, 2, 1, 3, 4)).reshape(B, C, E, H, W)
    out = jnp.sum(y * w_fus.reshape(1, C, E, 1, 1), axis=2) + b_fus.reshape(1, C, 1, 1)
    return out


if __name__ == "__main__":
    # small, tile-friendly config
    B, embed_dim, num_chans, expan_att_chans = 2, 32, 4, 2
    H = W = 16
    E = expan_att_chans
    num_heads = num_chans * E

    key = jax.random.PRNGKey(0)
    k1, k2, k3, k4, k5, k6 = jax.random.split(key, 6)

    x = jax.random.normal(k1, (B, embed_dim, H, W), jnp.float32)

    # group_qkv: Conv2d(C, C*3E, 1, groups=C) -> per-channel scale/bias, stored (C, 3E)
    w_qkv = jax.random.normal(k2, (embed_dim, 3 * E), jnp.float32) * 0.2
    b_qkv = jax.random.normal(k3, (embed_dim, 3 * E), jnp.float32) * 0.05
    # group_fus: Conv2d(C*E, C, 1, groups=C) -> (C, E) weights, (C,) bias
    w_fus = jax.random.normal(k4, (embed_dim, E), jnp.float32) * 0.2
    b_fus = jax.random.normal(k5, (embed_dim,), jnp.float32) * 0.05
    # t = nn.Parameter(torch.ones(1, num_heads, 1, 1)) -> perturb to make it non-trivial
    t = jnp.ones((num_heads,), jnp.float32) + 0.1 * jax.random.normal(k6, (num_heads,), jnp.float32)

    out = channel_attention_pallas(x, w_qkv, b_qkv, w_fus, b_fus, t,
                                   num_chans, expan_att_chans)
    out = jax.block_until_ready(out)

    ref = channel_attention_ref(x, w_qkv, b_qkv, w_fus, b_fus, t,
                                num_chans, expan_att_chans)
    assert out.shape == (B, embed_dim, H, W)
    assert jnp.allclose(out, ref, atol=1e-4, rtol=1e-4), \
        f"max err {jnp.max(jnp.abs(out - ref))}"

    print("KERNEL_OK")
</pallas_src>

<mosaic_0001>
module attributes {stable_mosaic.version = 11 : i64} {
  func.func @_channel_attn_kernel(%arg0: i32, %arg1: i32, %arg2: memref<1x1x8x256xf32, #tpu.memory_space<vmem>>, %arg3: memref<1x9x8x1xf32, #tpu.memory_space<vmem>>, %arg4: memref<1x8x1x8xf32, #tpu.memory_space<vmem>>, %arg5: memref<1x1x8x256xf32, #tpu.memory_space<vmem>>) attributes {dimension_semantics = [#tpu.dimension_semantics<parallel>, #tpu.dimension_semantics<parallel>], iteration_bounds = array<i64: 2, 4>, scalar_prefetch = 0 : i64, scratch_operands = 0 : i64, tpu.core_type = #tpu.core_type<tc>, window_params = [{transform_indices = @transform_0, window_bounds = array<i64: 1, 1, 8, 256>}, {transform_indices = @transform_1, window_bounds = array<i64: 1, 9, 8, 1>}, {transform_indices = @transform_2, window_bounds = array<i64: 1, 8, 1, 8>}, {transform_indices = @transform_3, window_bounds = array<i64: 1, 1, 8, 256>}]} {
    %c0 = arith.constant 0 : index
    %c0_0 = arith.constant 0 : index
    %c0_1 = arith.constant 0 : index
    %c0_2 = arith.constant 0 : index
    %0 = vector.load %arg2[%c0, %c0_0, %c0_1, %c0_2] : memref<1x1x8x256xf32, #tpu.memory_space<vmem>>, vector<1x1x8x256xf32>
    %1 = vector.shape_cast %0 : vector<1x1x8x256xf32> to vector<8x256xf32>
    %cst = arith.constant 1.000000e+00 : f32
    %2 = vector.broadcast %cst : f32 to vector<1x256xf32>
    %3 = tpu.iota {dimensions = array<i32: 0>} : vector<8x8xi32>
    %4 = tpu.iota {dimensions = array<i32: 1>} : vector<8x8xi32>
    %c0_i32 = arith.constant 0 : i32
    %5 = vector.broadcast %c0_i32 : i32 to vector<8x8xi32>
    %6 = arith.addi %3, %5 : vector<8x8xi32>
    %7 = arith.cmpi eq, %6, %4 : vector<8x8xi32>
    %8 = arith.extui %7 : vector<8x8xi1> to vector<8x8xi32>
    %9 = arith.sitofp %8 : vector<8x8xi32> to vector<8x8xf32>
    %cst_3 = arith.constant dense<0.000000e+00> : vector<8x8xf32>
    %10 = tpu.matmul %1, %1, %cst_3 {dimension_numbers = #tpu.dot_dimension_numbers<[1], [1], [0], [0], [0, 0, 1, 0], [], []>} : vector<8x256xf32>, vector<8x256xf32>, vector<8x8xf32> -> vector<8x8xf32>
    %cst_4 = arith.constant dense<0.000000e+00> : vector<8xf32>
    %11 = vector.multi_reduction <add>, %1, %cst_4 [1] : vector<8x256xf32> to vector<8xf32>
    %12 = vector.shape_cast %11 : vector<8xf32> to vector<8x1xf32>
    %cst_5 = arith.constant dense<0.000000e+00> : vector<1x8xf32>
    %13 = tpu.matmul %2, %1, %cst_5 {dimension_numbers = #tpu.dot_dimension_numbers<[1], [1], [0], [0], [0, 0, 1, 0], [], []>} : vector<1x256xf32>, vector<8x256xf32>, vector<1x8xf32> -> vector<1x8xf32>
    %14 = arith.mulf %10, %9 : vector<8x8xf32>
    %cst_6 = arith.constant dense<0.000000e+00> : vector<8xf32>
    %15 = vector.multi_reduction <add>, %14, %cst_6 [1] : vector<8x8xf32> to vector<8xf32>
    %16 = vector.shape_cast %15 : vector<8xf32> to vector<8x1xf32>
    %cst_7 = arith.constant dense<0.000000e+00> : vector<8xf32>
    %17 = vector.multi_reduction <add>, %14, %cst_7 [0] : vector<8x8xf32> to vector<8xf32>
    %18 = vector.shape_cast %17 : vector<8xf32> to vector<1x8xf32>
    %cst_8 = arith.constant 0.000000e+00 : f32
    %19 = vector.broadcast %cst_8 : f32 to vector<8x8xf32>
    %cst_9 = arith.constant 0.000000e+00 : f32
    %20 = vector.broadcast %cst_9 : f32 to vector<8x1xf32>
    %c0_10 = arith.constant 0 : index
    %c0_11 = arith.constant 0 : index
    %c0_12 = arith.constant 0 : index
    %c0_13 = arith.constant 0 : index
    %21 = vector.load %arg3[%c0_10, %c0_11, %c0_12, %c0_13] : memref<1x9x8x1xf32, #tpu.memory_space<vmem>>, vector<1x1x8x1xf32>
    %22 = vector.shape_cast %21 : vector<1x1x8x1xf32> to vector<8x1xf32>
    %c0_14 = arith.constant 0 : index
    %c2 = arith.constant 2 : index
    %c0_15 = arith.constant 0 : index
    %c0_16 = arith.constant 0 : index
    %23 = vector.load %arg3[%c0_14, %c2, %c0_15, %c0_16] : memref<1x9x8x1xf32, #tpu.memory_space<vmem>>, vector<1x1x8x1xf32>
    %24 = vector.shape_cast %23 : vector<1x1x8x1xf32> to vector<8x1xf32>
    %c0_17 = arith.constant 0 : index
    %c4 = arith.constant 4 : index
    %c0_18 = arith.constant 0 : index
    %c0_19 = arith.constant 0 : index
    %25 = vector.load %arg3[%c0_17, %c4, %c0_18, %c0_19] : memref<1x9x8x1xf32, #tpu.memory_space<vmem>>, vector<1x1x8x1xf32>
    %26 = vector.shape_cast %25 : vector<1x1x8x1xf32> to vector<8x1xf32>
    %c0_20 = arith.constant 0 : index
    %c6 = arith.constant 6 : index
    %c0_21 = arith.constant 0 : index
    %c0_22 = arith.constant 0 : index
    %27 = vector.load %arg3[%c0_20, %c6, %c0_21, %c0_22] : memref<1x9x8x1xf32, #tpu.memory_space<vmem>>, vector<1x1x8x1xf32>
    %28 = vector.shape_cast %27 : vector<1x1x8x1xf32> to vector<8x1xf32>
    %c0_23 = arith.constant 0 : index
    %c0_24 = arith.constant 0 : index
    %c0_25 = arith.constant 0 : index
    %c0_26 = arith.constant 0 : index
    %29 = vector.load %arg4[%c0_23, %c0_24, %c0_25, %c0_26] : memref<1x8x1x8xf32, #tpu.memory_space<vmem>>, vector<1x1x1x8xf32>
    %30 = vector.shape_cast %29 : vector<1x1x1x8xf32> to vector<1x8xf32>
    %c0_27 = arith.constant 0 : index
    %c2_28 = arith.constant 2 : index
    %c0_29 = arith.constant 0 : index
    %c0_30 = arith.constant 0 : index
    %31 = vector.load %arg4[%c0_27, %c2_28, %c0_29, %c0_30] : memref<1x8x1x8xf32, #tpu.memory_space<vmem>>, vector<1x1x1x8xf32>
    %32 = vector.shape_cast %31 : vector<1x1x1x8xf32> to vector<1x8xf32>
    %c0_31 = arith.constant 0 : index
    %c4_32 = arith.constant 4 : index
    %c0_33 = arith.constant 0 : index
    %c0_34 = arith.constant 0 : index
    %33 = vector.load %arg4[%c0_31, %c4_32, %c0_33, %c0_34] : memref<1x8x1x8xf32, #tpu.memory_space<vmem>>, vector<1x1x1x8xf32>
    %34 = vector.shape_cast %33 : vector<1x1x1x8xf32> to vector<1x8xf32>
    %c0_35 = arith.constant 0 : index
    %c6_36 = arith.constant 6 : index
    %c0_37 = arith.constant 0 : index
    %c0_38 = arith.constant 0 : index
    %35 = vector.load %arg4[%c0_35, %c6_36, %c0_37, %c0_38] : memref<1x8x1x8xf32, #tpu.memory_space<vmem>>, vector<1x1x1x8xf32>
    %36 = vector.shape_cast %35 : vector<1x1x1x8xf32> to vector<1x8xf32>
    %37 = vector.broadcast %22 : vector<8x1xf32> to vector<8x8xf32>
    %38 = vector.broadcast %30 : vector<1x8xf32> to vector<8x8xf32>
    %39 = arith.mulf %37, %38 : vector<8x8xf32>
    %40 = arith.mulf %39, %10 : vector<8x8xf32>
    %41 = arith.mulf %22, %12 : vector<8x1xf32>
    %42 = vector.broadcast %41 : vector<8x1xf32> to vector<8x8xf32>
    %43 = vector.broadcast %32 : vector<1x8xf32> to vector<8x8xf32>
    %44 = arith.mulf %42, %43 : vector<8x8xf32>
    %45 = arith.addf %40, %44 : vector<8x8xf32>
    %46 = arith.mulf %30, %13 : vector<1x8xf32>
    %47 = vector.broadcast %24 : vector<8x1xf32> to vector<8x8xf32>
    %48 = vector.broadcast %46 : vector<1x8xf32> to vector<8x8xf32>
    %49 = arith.mulf %47, %48 : vector<8x8xf32>
    %50 = arith.addf %45, %49 : vector<8x8xf32>
    %cst_39 = arith.constant 2.560000e+02 : f32
    %51 = vector.broadcast %cst_39 : f32 to vector<8x1xf32>
    %52 = arith.mulf %51, %24 : vector<8x1xf32>
    %53 = vector.broadcast %52 : vector<8x1xf32> to vector<8x8xf32>
    %54 = vector.broadcast %32 : vector<1x8xf32> to vector<8x8xf32>
    %55 = arith.mulf %53, %54 : vector<8x8xf32>
    %56 = arith.addf %50, %55 : vector<8x8xf32>
    %57 = arith.mulf %22, %22 : vector<8x1xf32>
    %58 = arith.mulf %57, %16 : vector<8x1xf32>
    %cst_40 = arith.constant 2.000000e+00 : f32
    %59 = vector.broadcast %cst_40 : f32 to vector<8x1xf32>
    %60 = arith.mulf %59, %22 : vector<8x1xf32>
    %61 = arith.mulf %60, %24 : vector<8x1xf32>
    %62 = arith.mulf %61, %12 : vector<8x1xf32>
    %63 = arith.addf %58, %62 : vector<8x1xf32>
    %64 = arith.mulf %24, %24 : vector<8x1xf32>
    %cst_41 = arith.constant 2.560000e+02 : f32
    %65 = vector.broadcast %cst_41 : f32 to vector<8x1xf32>
    %66 = arith.mulf %64, %65 : vector<8x1xf32>
    %67 = arith.addf %63, %66 : vector<8x1xf32>
    %68 = arith.mulf %30, %30 : vector<1x8xf32>
    %69 = arith.mulf %68, %18 : vector<1x8xf32>
    %cst_42 = arith.constant 2.000000e+00 : f32
    %70 = vector.broadcast %cst_42 : f32 to vector<1x8xf32>
    %71 = arith.mulf %70, %30 : vector<1x8xf32>
    %72 = arith.mulf %71, %32 : vector<1x8xf32>
    %73 = arith.mulf %72, %13 : vector<1x8xf32>
    %74 = arith.addf %69, %73 : vector<1x8xf32>
    %75 = arith.mulf %32, %32 : vector<1x8xf32>
    %cst_43 = arith.constant 2.560000e+02 : f32
    %76 = vector.broadcast %cst_43 : f32 to vector<1x8xf32>
    %77 = arith.mulf %75, %76 : vector<1x8xf32>
    %78 = arith.addf %74, %77 : vector<1x8xf32>
    %cst_44 = arith.constant 1.000000e-24 : f32
    %79 = vector.broadcast %cst_44 : f32 to vector<8x1xf32>
    %80 = arith.maximumf %67, %79 : vector<8x1xf32>
    %81 = math.rsqrt %80 : vector<8x1xf32>
    %82 = arith.mulf %28, %81 : vector<8x1xf32>
    %83 = vector.broadcast %82 : vector<8x1xf32> to vector<8x8xf32>
    %84 = arith.mulf %56, %83 : vector<8x8xf32>
    %cst_45 = arith.constant 1.000000e-24 : f32
    %85 = vector.broadcast %cst_45 : f32 to vector<1x8xf32>
    %86 = arith.maximumf %78, %85 : vector<1x8xf32>
    %87 = math.rsqrt %86 : vector<1x8xf32>
    %88 = vector.broadcast %87 : vector<1x8xf32> to vector<8x8xf32>
    %89 = arith.mulf %84, %88 : vector<8x8xf32>
    %cst_46 = arith.constant dense<0xFF800000> : vector<8xf32>
    %90 = vector.multi_reduction <maximumf>, %89, %cst_46 [1] : vector<8x8xf32> to vector<8xf32>
    %91 = vector.shape_cast %90 : vector<8xf32> to vector<8x1xf32>
    %92 = vector.broadcast %91 : vector<8x1xf32> to vector<8x8xf32>
    %93 = arith.subf %89, %92 : vector<8x8xf32>
    %94 = math.exp %93 : vector<8x8xf32>
    %cst_47 = arith.constant dense<0.000000e+00> : vector<8xf32>
    %95 = vector.multi_reduction <add>, %94, %cst_47 [1] : vector<8x8xf32> to vector<8xf32>
    %96 = vector.shape_cast %95 : vector<8xf32> to vector<8x1xf32>
    %97 = vector.broadcast %96 : vector<8x1xf32> to vector<8x8xf32>
    %98 = arith.divf %94, %97 : vector<8x8xf32>
    %99 = vector.broadcast %26 : vector<8x1xf32> to vector<8x8xf32>
    %100 = arith.mulf %99, %98 : vector<8x8xf32>
    %101 = vector.broadcast %34 : vector<1x8xf32> to vector<8x8xf32>
    %102 = arith.mulf %100, %101 : vector<8x8xf32>
    %103 = arith.addf %19, %102 : vector<8x8xf32>
    %104 = vector.broadcast %36 : vector<1x8xf32> to vector<8x8xf32>
    %105 = arith.mulf %100, %104 : vector<8x8xf32>
    %cst_48 = arith.constant dense<0.000000e+00> : vector<8xf32>
    %106 = vector.multi_reduction <add>, %105, %cst_48 [1] : vector<8x8xf32> to vector<8xf32>
    %107 = vector.shape_cast %106 : vector<8xf32> to vector<8x1xf32>
    %108 = arith.addf %20, %107 : vector<8x1xf32>
    %c0_49 = arith.constant 0 : index
    %c1 = arith.constant 1 : index
    %c0_50 = arith.constant 0 : index
    %c0_51 = arith.constant 0 : index
    %109 = vector.load %arg3[%c0_49, %c1, %c0_50, %c0_51] : memref<1x9x8x1xf32, #tpu.memory_space<vmem>>, vector<1x1x8x1xf32>
    %110 = vector.shape_cast %109 : vector<1x1x8x1xf32> to vector<8x1xf32>
    %c0_52 = arith.constant 0 : index
    %c3 = arith.constant 3 : index
    %c0_53 = arith.constant 0 : index
    %c0_54 = arith.constant 0 : index
    %111 = vector.load %arg3[%c0_52, %c3, %c0_53, %c0_54] : memref<1x9x8x1xf32, #tpu.memory_space<vmem>>, vector<1x1x8x1xf32>
    %112 = vector.shape_cast %111 : vector<1x1x8x1xf32> to vector<8x1xf32>
    %c0_55 = arith.constant 0 : index
    %c5 = arith.constant 5 : index
    %c0_56 = arith.constant 0 : index
    %c0_57 = arith.constant 0 : index
    %113 = vector.load %arg3[%c0_55, %c5, %c0_56, %c0_57] : memref<1x9x8x1xf32, #tpu.memory_space<vmem>>, vector<1x1x8x1xf32>
    %114 = vector.shape_cast %113 : vector<1x1x8x1xf32> to vector<8x1xf32>
    %c0_58 = arith.constant 0 : index
    %c7 = arith.constant 7 : index
    %c0_59 = arith.constant 0 : index
    %c0_60 = arith.constant 0 : index
    %115 = vector.load %arg3[%c0_58, %c7, %c0_59, %c0_60] : memref<1x9x8x1xf32, #tpu.memory_space<vmem>>, vector<1x1x8x1xf32>
    %116 = vector.shape_cast %115 : vector<1x1x8x1xf32> to vector<8x1xf32>
    %c0_61 = arith.constant 0 : index
    %c1_62 = arith.constant 1 : index
    %c0_63 = arith.constant 0 : index
    %c0_64 = arith.constant 0 : index
    %117 = vector.load %arg4[%c0_61, %c1_62, %c0_63, %c0_64] : memref<1x8x1x8xf32, #tpu.memory_space<vmem>>, vector<1x1x1x8xf32>
    %118 = vector.shape_cast %117 : vector<1x1x1x8xf32> to vector<1x8xf32>
    %c0_65 = arith.constant 0 : index
    %c3_66 = arith.constant 3 : index
    %c0_67 = arith.constant 0 : index
    %c0_68 = arith.constant 0 : index
    %119 = vector.load %arg4[%c0_65, %c3_66, %c0_67, %c0_68] : memref<1x8x1x8xf32, #tpu.memory_space<vmem>>, vector<1x1x1x8xf32>
    %120 = vector.shape_cast %119 : vector<1x1x1x8xf32> to vector<1x8xf32>
    %c0_69 = arith.constant 0 : index
    %c5_70 = arith.constant 5 : index
    %c0_71 = arith.constant 0 : index
    %c0_72 = arith.constant 0 : index
    %121 = vector.load %arg4[%c0_69, %c5_70, %c0_71, %c0_72] : memref<1x8x1x8xf32, #tpu.memory_space<vmem>>, vector<1x1x1x8xf32>
    %122 = vector.shape_cast %121 : vector<1x1x1x8xf32> to vector<1x8xf32>
    %c0_73 = arith.constant 0 : index
    %c7_74 = arith.constant 7 : index
    %c0_75 = arith.constant 0 : index
    %c0_76 = arith.constant 0 : index
    %123 = vector.load %arg4[%c0_73, %c7_74, %c0_75, %c0_76] : memref<1x8x1x8xf32, #tpu.memory_space<vmem>>, vector<1x1x1x8xf32>
    %124 = vector.shape_cast %123 : vector<1x1x1x8xf32> to vector<1x8xf32>
    %125 = vector.broadcast %110 : vector<8x1xf32> to vector<8x8xf32>
    %126 = vector.broadcast %118 : vector<1x8xf32> to vector<8x8xf32>
    %127 = arith.mulf %125, %126 : vector<8x8xf32>
    %128 = arith.mulf %127, %10 : vector<8x8xf32>
    %129 = arith.mulf %110, %12 : vector<8x1xf32>
    %130 = vector.broadcast %129 : vector<8x1xf32> to vector<8x8xf32>
    %131 = vector.broadcast %120 : vector<1x8xf32> to vector<8x8xf32>
    %132 = arith.mulf %130, %131 : vector<8x8xf32>
    %133 = arith.addf %128, %132 : vector<8x8xf32>
    %134 = arith.mulf %118, %13 : vector<1x8xf32>
    %135 = vector.broadcast %112 : vector<8x1xf32> to vector<8x8xf32>
    %136 = vector.broadcast %134 : vector<1x8xf32> to vector<8x8xf32>
    %137 = arith.mulf %135, %136 : vector<8x8xf32>
    %138 = arith.addf %133, %137 : vector<8x8xf32>
    %cst_77 = arith.constant 2.560000e+02 : f32
    %139 = vector.broadcast %cst_77 : f32 to vector<8x1xf32>
    %140 = arith.mulf %139, %112 : vector<8x1xf32>
    %141 = vector.broadcast %140 : vector<8x1xf32> to vector<8x8xf32>
    %142 = vector.broadcast %120 : vector<1x8xf32> to vector<8x8xf32>
    %143 = arith.mulf %141, %142 : vector<8x8xf32>
    %144 = arith.addf %138, %143 : vector<8x8xf32>
    %145 = arith.mulf %110, %110 : vector<8x1xf32>
    %146 = arith.mulf %145, %16 : vector<8x1xf32>
    %cst_78 = arith.constant 2.000000e+00 : f32
    %147 = vector.broadcast %cst_78 : f32 to vector<8x1xf32>
    %148 = arith.mulf %147, %110 : vector<8x1xf32>
    %149 = arith.mulf %148, %112 : vector<8x1xf32>
    %150 = arith.mulf %149, %12 : vector<8x1xf32>
    %151 = arith.addf %146, %150 : vector<8x1xf32>
    %152 = arith.mulf %112, %112 : vector<8x1xf32>
    %cst_79 = arith.constant 2.560000e+02 : f32
    %153 = vector.broadcast %cst_79 : f32 to vector<8x1xf32>
    %154 = arith.mulf %152, %153 : vector<8x1xf32>
    %155 = arith.addf %151, %154 : vector<8x1xf32>
    %156 = arith.mulf %118, %118 : vector<1x8xf32>
    %157 = arith.mulf %156, %18 : vector<1x8xf32>
    %cst_80 = arith.constant 2.000000e+00 : f32
    %158 = vector.broadcast %cst_80 : f32 to vector<1x8xf32>
    %159 = arith.mulf %158, %118 : vector<1x8xf32>
    %160 = arith.mulf %159, %120 : vector<1x8xf32>
    %161 = arith.mulf %160, %13 : vector<1x8xf32>
    %162 = arith.addf %157, %161 : vector<1x8xf32>
    %163 = arith.mulf %120, %120 : vector<1x8xf32>
    %cst_81 = arith.constant 2.560000e+02 : f32
    %164 = vector.broadcast %cst_81 : f32 to vector<1x8xf32>
    %165 = arith.mulf %163, %164 : vector<1x8xf32>
    %166 = arith.addf %162, %165 : vector<1x8xf32>
    %cst_82 = arith.constant 1.000000e-24 : f32
    %167 = vector.broadcast %cst_82 : f32 to vector<8x1xf32>
    %168 = arith.maximumf %155, %167 : vector<8x1xf32>
    %169 = math.rsqrt %168 : vector<8x1xf32>
    %170 = arith.mulf %116, %169 : vector<8x1xf32>
    %171 = vector.broadcast %170 : vector<8x1xf32> to vector<8x8xf32>
    %172 = arith.mulf %144, %171 : vector<8x8xf32>
    %cst_83 = arith.constant 1.000000e-24 : f32
    %173 = vector.broadcast %cst_83 : f32 to vector<1x8xf32>
    %174 = arith.maximumf %166, %173 : vector<1x8xf32>
    %175 = math.rsqrt %174 : vector<1x8xf32>
    %176 = vector.broadcast %175 : vector<1x8xf32> to vector<8x8xf32>
    %177 = arith.mulf %172, %176 : vector<8x8xf32>
    %cst_84 = arith.constant dense<0xFF800000> : vector<8xf32>
    %178 = vector.multi_reduction <maximumf>, %177, %cst_84 [1] : vector<8x8xf32> to vector<8xf32>
    %179 = vector.shape_cast %178 : vector<8xf32> to vector<8x1xf32>
    %180 = vector.broadcast %179 : vector<8x1xf32> to vector<8x8xf32>
    %181 = arith.subf %177, %180 : vector<8x8xf32>
    %182 = math.exp %181 : vector<8x8xf32>
    %cst_85 = arith.constant dense<0.000000e+00> : vector<8xf32>
    %183 = vector.multi_reduction <add>, %182, %cst_85 [1] : vector<8x8xf32> to vector<8xf32>
    %184 = vector.shape_cast %183 : vector<8xf32> to vector<8x1xf32>
    %185 = vector.broadcast %184 : vector<8x1xf32> to vector<8x8xf32>
    %186 = arith.divf %182, %185 : vector<8x8xf32>
    %187 = vector.broadcast %114 : vector<8x1xf32> to vector<8x8xf32>
    %188 = arith.mulf %187, %186 : vector<8x8xf32>
    %189 = vector.broadcast %122 : vector<1x8xf32> to vector<8x8xf32>
    %190 = arith.mulf %188, %189 : vector<8x8xf32>
    %191 = arith.addf %103, %190 : vector<8x8xf32>
    %192 = vector.broadcast %124 : vector<1x8xf32> to vector<8x8xf32>
    %193 = arith.mulf %188, %192 : vector<8x8xf32>
    %cst_86 = arith.constant dense<0.000000e+00> : vector<8xf32>
    %194 = vector.multi_reduction <add>, %193, %cst_86 [1] : vector<8x8xf32> to vector<8xf32>
    %195 = vector.shape_cast %194 : vector<8xf32> to vector<8x1xf32>
    %196 = arith.addf %108, %195 : vector<8x1xf32>
    %c0_87 = arith.constant 0 : index
    %c8 = arith.constant 8 : index
    %c0_88 = arith.constant 0 : index
    %c0_89 = arith.constant 0 : index
    %197 = vector.load %arg3[%c0_87, %c8, %c0_88, %c0_89] : memref<1x9x8x1xf32, #tpu.memory_space<vmem>>, vector<1x1x8x1xf32>
    %198 = vector.shape_cast %197 : vector<1x1x8x1xf32> to vector<8x1xf32>
    %cst_90 = arith.constant dense<0.000000e+00> : vector<8x256xf32>
    %199 = tpu.matmul %191, %1, %cst_90 {dimension_numbers = #tpu.dot_dimension_numbers<[1], [0], [0], [1], [0, 0, 1, 1], [], []>} : vector<8x8xf32>, vector<8x256xf32>, vector<8x256xf32> -> vector<8x256xf32>
    %200 = arith.addf %196, %198 : vector<8x1xf32>
    %201 = vector.broadcast %200 : vector<8x1xf32> to vector<8x256xf32>
    %202 = arith.addf %199, %201 : vector<8x256xf32>
    %c0_91 = arith.constant 0 : index
    %c0_92 = arith.constant 0 : index
    %c0_93 = arith.constant 0 : index
    %c0_94 = arith.constant 0 : index
    %203 = vector.load %arg5[%c0_91, %c0_92, %c0_93, %c0_94] : memref<1x1x8x256xf32, #tpu.memory_space<vmem>>, vector<1x1x8x256xf32>
    %204 = vector.shape_cast %203 : vector<1x1x8x256xf32> to vector<8x256xf32>
    %205 = vector.shape_cast %202 : vector<8x256xf32> to vector<1x1x8x256xf32>
    tpu.vector_store %arg5[%c0_91, %c0_92, %c0_93, %c0_94], %205 {strides = array<i32>} : memref<1x1x8x256xf32, #tpu.memory_space<vmem>>, vector<1x1x8x256xf32>,
    return
  }
  func.func @transform_0(%arg0: i32, %arg1: i32) -> (i32, i32, i32, i32) {
    %c0_i32 = arith.constant 0 : i32
    %c0_i32_0 = arith.constant 0 : i32
    %c0_i32_1 = arith.constant 0 : i32
    return %arg0, %arg1, %c0_i32, %c0_i32_0 : i32, i32, i32, i32
  }
  func.func @transform_1(%arg0: i32, %arg1: i32) -> (i32, i32, i32, i32) {
    %c0_i32 = arith.constant 0 : i32
    %c0_i32_0 = arith.constant 0 : i32
    %c0_i32_1 = arith.constant 0 : i32
    %c0_i32_2 = arith.constant 0 : i32
    return %arg1, %c0_i32, %c0_i32_0, %c0_i32_1 : i32, i32, i32, i32
  }
  func.func @transform_2(%arg0: i32, %arg1: i32) -> (i32, i32, i32, i32) {
    %c0_i32 = arith.constant 0 : i32
    %c0_i32_0 = arith.constant 0 : i32
    %c0_i32_1 = arith.constant 0 : i32
    %c0_i32_2 = arith.constant 0 : i32
    return %arg1, %c0_i32, %c0_i32_0, %c0_i32_1 : i32, i32, i32, i32
  }
  func.func @transform_3(%arg0: i32, %arg1: i32) -> (i32, i32, i32, i32) {
    %c0_i32 = arith.constant 0 : i32
    %c0_i32_0 = arith.constant 0 : i32
    %c0_i32_1 = arith.constant 0 : i32
    return %arg0, %arg1, %c0_i32, %c0_i32_0 : i32, i32, i32, i32
  }
}

</mosaic_0001>

<llo_original>
// kernel: tpu_custom_call.1
$region0: #{tpu_custom_call.1}
  #allocation0 [shape = 'u32[]', space=smem, size = 0x4, offset = 0x4, fixed_abs, tag = 'smem constant byte address 0x4 - core index']
  #allocation1 [shape = 'u32[144,128]{1,0:T(1,128)}', space=vmem, size = 0x12000, scoped, tag = 'internal scratch']
  %s0 = inlined_call_operand.vmem [shape: f32[2,4,8,256], index: 0, kind: input, shape index: {}]
  %s1 = inlined_call_operand.vmem [shape: f32[4,9,8,1], index: 1, kind: input, shape index: {}]
  %s2 = inlined_call_operand.vmem [shape: f32[4,8,1,8], index: 2, kind: input, shape index: {}]
  %s3 = inlined_call_operand.hbm [shape: f32[2,4,8,256], index: 3, kind: output, shape index: {}]
  %s4 = sld [smem:[#allocation0]]
  $region45: #{tpu_custom_call.1} parent=0
    _
  %s6 = ssub.s32 1, %s4
  %s7 = scalar_select 0, %s6, %s4
  $region1: #{tpu_custom_call.1} parent=0
    #allocation2 [shape = 'u8[16384]{0}', space=vmem, size = 0x4000, scoped, tag = 'output window, operand 0']
    #allocation3 [shape = 's32[2]{0}', space=sflag, size = 0x8, scoped, tag = 'scoped memory for tpu_custom_call.1']
    %8 = vsyncpa [#allocation3], 0
    %s9 = scalar_lea.sflag [#allocation3], 1
    %10 = vsyncpa %s9, 0
    loop: start=0, step=1, limit=10
    $region2: #{tpu_custom_call.1} parent=1 // loop_pre_header
      _
    $region3: #{tpu_custom_call.1} parent=1 // loop_header
      %s12 = sphi 0, %s16
      %p13 = scmp.ge.s32.totalorder %s12, 10
      %s19 = sphi 0, %s31
      %s20 = sphi 0, %s27
      %s21 = sphi 0, %s19
      %s22 = sphi 0, %s20
      %s23 = sphi 0, %s21
      %s24 = sphi 0, %s22
      %s36 = sphi 0, %s38
      %s39 = sphi 0, %s36
      %s40 = sphi 0, %s39
      %s56 = sphi 0, %s40
      %s62 = sphi 0, %s64
      %s65 = sphi 0, %s62
      %s66 = sphi 0, %s65
      %s82 = sphi 0, %s66
      %s88 = sphi 0, %s90
      %s91 = sphi 0, %s88
      %s92 = sphi 0, %s91
      %s108 = sphi 0, %s92
      %s116 = sphi 0, %s118
      %s119 = sphi 0, %s116
      %s120 = sphi 0, %s119
      %s136 = sphi 0, %s120
    $region4: #{tpu_custom_call.1} parent=1 // loop_header_branch
      %15 = sbr.rel (%p13) target = $region8
    $region5: #{tpu_custom_call.1} parent=1 // loop_body
      %s17 = ssub.s32 %s12, 1
      %s18 = ssub.s32 %s12, 2
      %s25 = sadd.s32 1, %s20
      %p26 = scmp.ge.s32.totalorder %s25, 4
      %s27 = scalar_select %p26, 0, %s25
      %s28 = sadd.s32 1, %s19
      %s29 = scalar_select %p26, %s28, %s19
      %p30 = scmp.ge.s32.totalorder %s29, 2
      %s31 = scalar_select %p30, 0, %s29
      %s32 = ssub.s32 %s19, %s31
      %s33 = ssub.s32 %s20, %s27
      %s34 = sor.u32 %s32, %s33
      %p35 = scmp.eq.s32.totalorder %s34, 0
      %s37 = sadd.s32 %s36, 1
      %s38 = scalar_select %p35, %s36, %s37
      %p41 = pneg %p35
      %p42 = scmp.eq.s32.totalorder %s12, 7
      %p43 = por %p41, %p42
      %p44 = scmp.ne.s32.totalorder %s36, %s39
      %p45 = scmp.eq.s32.totalorder %s12, 0
      %p46 = por %p44, %p45
      %p47 = scmp.ne.s32.totalorder %s36, %s39
      %p48 = scmp.eq.s32.totalorder %s17, 7
      %p49 = por %p47, %p48
      %p50 = scmp.ne.s32.totalorder %s39, %s40
      %p51 = scmp.eq.s32.totalorder %s17, 0
      %p52 = por %p50, %p51
      %p53 = scmp.ne.s32.totalorder %s39, %s40
      %p54 = scmp.eq.s32.totalorder %s18, 7
      %p55 = por %p53, %p54
      %p57 = scmp.ne.s32.totalorder %s40, %s56
      %p58 = scmp.eq.s32.totalorder %s18, 0
      %p59 = por %p57, %p58
      %s60 = ssub.s32 %s20, %s27
      %p61 = scmp.eq.s32.totalorder %s60, 0
      %s63 = sadd.s32 %s62, 1
      %s64 = scalar_select %p61, %s62, %s63
      %p67 = pneg %p61
      %p68 = scmp.eq.s32.totalorder %s12, 7
      %p69 = por %p67, %p68
      %p70 = scmp.ne.s32.totalorder %s62, %s65
      %p71 = scmp.eq.s32.totalorder %s12, 0
      %p72 = por %p70, %p71
      %p73 = scmp.ne.s32.totalorder %s62, %s65
      %p74 = scmp.eq.s32.totalorder %s17, 7
      %p75 = por %p73, %p74
      %p76 = scmp.ne.s32.totalorder %s65, %s66
      %p77 = scmp.eq.s32.totalorder %s17, 0
      %p78 = por %p76, %p77
      %p79 = scmp.ne.s32.totalorder %s65, %s66
      %p80 = scmp.eq.s32.totalorder %s18, 7
      %p81 = por %p79, %p80
      %p83 = scmp.ne.s32.totalorder %s66, %s82
      %p84 = scmp.eq.s32.totalorder %s18, 0
      %p85 = por %p83, %p84
      %s86 = ssub.s32 %s20, %s27
      %p87 = scmp.eq.s32.totalorder %s86, 0
      %s89 = sadd.s32 %s88, 1
      %s90 = scalar_select %p87, %s88, %s89
      %p93 = pneg %p87
      %p94 = scmp.eq.s32.totalorder %s12, 7
      %p95 = por %p93, %p94
      %p96 = scmp.ne.s32.totalorder %s88, %s91
      %p97 = scmp.eq.s32.totalorder %s12, 0
      %p98 = por %p96, %p97
      %p99 = scmp.ne.s32.totalorder %s88, %s91
      %p100 = scmp.eq.s32.totalorder %s17, 7
      %p101 = por %p99, %p100
      %p102 = scmp.ne.s32.totalorder %s91, %s92
      %p103 = scmp.eq.s32.totalorder %s17, 0
      %p104 = por %p102, %p103
      %p105 = scmp.ne.s32.totalorder %s91, %s92
      %p106 = scmp.eq.s32.totalorder %s18, 7
      %p107 = por %p105, %p106
      %p109 = scmp.ne.s32.totalorder %s92, %s108
      %p110 = scmp.eq.s32.totalorder %s18, 0
      %p111 = por %p109, %p110
      %s112 = ssub.s32 %s19, %s31
      %s113 = ssub.s32 %s20, %s27
      %s114 = sor.u32 %s112, %s113
      %p115 = scmp.eq.s32.totalorder %s114, 0
      %s117 = sadd.s32 %s116, 1
      %s118 = scalar_select %p115, %s116, %s117
      %p121 = pneg %p115
      %p122 = scmp.eq.s32.totalorder %s12, 7
      %p123 = por %p121, %p122
      %p124 = scmp.ne.s32.totalorder %s116, %s119
      %p125 = scmp.eq.s32.totalorder %s12, 0
      %p126 = por %p124, %p125
      %p127 = scmp.ne.s32.totalorder %s116, %s119
      %p128 = scmp.eq.s32.totalorder %s17, 7
      %p129 = por %p127, %p128
      %p130 = scmp.ne.s32.totalorder %s119, %s120
      %p131 = scmp.eq.s32.totalorder %s17, 0
      %p132 = por %p130, %p131
      %p133 = scmp.ne.s32.totalorder %s119, %s120
      %p134 = scmp.eq.s32.totalorder %s18, 7
      %p135 = por %p133, %p134
      %p137 = scmp.ne.s32.totalorder %s120, %s136
      %p138 = scmp.eq.s32.totalorder %s18, 0
      %p139 = por %p137, %p138
      %p140 = scmp.le.s32.totalorder 1, %s12
      %p141 = scmp.lt.s32.totalorder %s12, 9
      %p142 = pnand %p140, %p141
      %p143 = pneg %p142
      // Predicated region
      $region9: #{tpu_custom_call.1} parent=5 // pred_check
        _
      $region10: #{tpu_custom_call.1} parent=5 // pred_check_branch
        %145 = sbr.rel (%p142) target = $region12
      $region11: #{tpu_custom_call.1} parent=5 // pred_region
        %s146 = ssub.s32 %s12, 1
      $region12: #{tpu_custom_call.1} parent=5 // pred_fallthru
        _
      %p147 = scmp.lt.s32.totalorder %s12, 8
      // Predicated region
      $region13: #{tpu_custom_call.1} parent=5 // pred_check
        %p148 = pneg %p147
      $region14: #{tpu_custom_call.1} parent=5 // pred_check_branch
        %150 = sbr.rel (%p148) target = $region16
      $region15: #{tpu_custom_call.1} parent=5 // pred_region
        // Predicated region
        $region17: #{tpu_custom_call.1} parent=15 // pred_check
          %p151 = pneg %p46
        $region18: #{tpu_custom_call.1} parent=15 // pred_check_branch
          %153 = sbr.rel (%p151) target = $region20
        $region19: #{tpu_custom_call.1} parent=15 // pred_region
          %p154 = scmp.lt.s32.totalorder %s19, 1
          %s155 = scalar_select %p154, %s19, 1
          %p156 = scmp.lt.s32.totalorder %s20, 3
          %s157 = scalar_select %p156, %s20, 3
          %s158 = smul.addr %s157, 2
          %s159 = smul.addr %s155, 8
          %s160 = sadd.s32 %s158, %s159
          %s161 = smul.addr %s160, 8
          %s162 = scalar_lea.vmem %s0, %s161
        $region20: #{tpu_custom_call.1} parent=15 // pred_fallthru
          _
        // Predicated region
        $region21: #{tpu_custom_call.1} parent=15 // pred_check
          %p163 = pneg %p72
        $region22: #{tpu_custom_call.1} parent=15 // pred_check_branch
          %165 = sbr.rel (%p163) target = $region24
        $region23: #{tpu_custom_call.1} parent=15 // pred_region
          %p166 = scmp.lt.s32.totalorder %s20, 3
          %s167 = scalar_select %p166, %s20, 3
          %s168 = smul.addr %s167, 9
          %s169 = smul.addr %s168, 8
          %s170 = scalar_lea.vmem %s1, %s169
        $region24: #{tpu_custom_call.1} parent=15 // pred_fallthru
          _
        // Predicated region
        $region25: #{tpu_custom_call.1} parent=15 // pred_check
          %p171 = pneg %p98
        $region26: #{tpu_custom_call.1} parent=15 // pred_check_branch
          %173 = sbr.rel (%p171) target = $region28
        $region27: #{tpu_custom_call.1} parent=15 // pred_region
          %p174 = scmp.lt.s32.totalorder %s20, 3
          %s175 = scalar_select %p174, %s20, 3
          %s176 = smul.addr %s175, 8
          %s177 = scalar_lea.vmem %s2, %s176
        $region28: #{tpu_custom_call.1} parent=15 // pred_fallthru
          _
      $region16: #{tpu_custom_call.1} parent=5 // pred_fallthru
        _
      %p178 = scmp.le.s32.totalorder 1, %s12
      %p179 = scmp.lt.s32.totalorder %s12, 9
      %p180 = pnand %p178, %p179
      %p181 = pneg %p180
      // Predicated region
      $region29: #{tpu_custom_call.1} parent=5 // pred_check
        _
      $region30: #{tpu_custom_call.1} parent=5 // pred_check_branch
        %183 = sbr.rel (%p180) target = $region32
      $region31: #{tpu_custom_call.1} parent=5 // pred_region
        %s184 = ssub.s32 %s12, 1
        %p185 = scmp.lt.s32.totalorder %s21, 1
        %s186 = scalar_select %p185, %s21, 1
        %p187 = scmp.lt.s32.totalorder %s22, 3
        %s188 = scalar_select %p187, %s22, 3
        %s189 = smul.addr %s188, 2
        %s190 = smul.addr %s186, 8
        %s191 = sadd.s32 %s189, %s190
        %s192 = smul.addr %s191, 8
        %s193 = scalar_lea.vmem %s0, %s192
        %p194 = pneg %p52
        %p195 = pneg %p49
        %p196 = scmp.lt.s32.totalorder %s22, 3
        %s197 = scalar_select %p196, %s22, 3
        %s198 = smul.addr %s197, 9
        %s199 = smul.addr %s198, 8
        %s200 = scalar_lea.vmem %s1, %s199
        %p201 = pneg %p78
        %p202 = pneg %p75
        %p203 = scmp.lt.s32.totalorder %s22, 3
        %s204 = scalar_select %p203, %s22, 3
        %s205 = smul.addr %s204, 8
        %s206 = scalar_lea.vmem %s2, %s205
        %p207 = pneg %p104
        %p208 = pneg %p101
        %p209 = pneg %p132
        %p210 = pneg %p129
        %s211 = sand.u32 %s119, 1
        %s212 = scalar_lea.sflag [#allocation3], %s211
        %s213 = sand.u32 %s119, 1
        %s214 = smul.addr %s213, 16
        %s215 = scalar_lea.vmem [#allocation2], %s214
        %p216 = scmp.lt.s32.totalorder %s21, 1
        %s217 = scalar_select %p216, %s21, 1
        %p218 = scmp.lt.s32.totalorder %s22, 3
        %s219 = scalar_select %p218, %s22, 3
        %s220 = smul.addr %s219, 2
        %s221 = smul.addr %s217, 8
        %s222 = sadd.s32 %s220, %s221
        %s223 = smul.addr %s222, 8
        %s224 = scalar_lea.vmem %s0, %s223
        %p225 = scmp.lt.s32.totalorder %s22, 3
        %s226 = scalar_select %p225, %s22, 3
        %s227 = smul.addr %s226, 9
        %s228 = smul.addr %s227, 8
        %s229 = scalar_lea.vmem %s1, %s228
        %p230 = scmp.lt.s32.totalorder %s22, 3
        %s231 = scalar_select %p230, %s22, 3
        %s232 = smul.addr %s231, 8
        %s233 = scalar_lea.vmem %s2, %s232
        %v234 = vld [vmem:[%s224] sm:$0xff]
        %v235 = vld [vmem:[%s224 + $0x8] sm:$0xff]
        %v236 = vlaneseq
        %v237 = vshrl.u32 %v236, 7
        %v238 = vlaneseq
        %v239 = vand.u32 %v238, 127
        %vm240 = vcmp.eq.s32.totalorder %v237, %v239
        %v241 = vsel %vm240, 1, 0
        %v242 = vcvt.s32.f32 %v241
        %243 = vmatprep.subr.mxu0 %v235
        %244 = vmatpush1.xpose.msra.mxu0 %v234
        %245 = vmatprep.subr.mxu0 0.0
        %246 = vmatpush1.xpose.msra.mxu0 0.0
        %247 = vmatprep.subr.mxu0 0.0
        %248 = vmatpush1.xpose.msra.mxu0 0.0
        %249 = vmatprep.subr.mxu0 0.0
        %250 = vmatpush1.xpose.msra.mxu0 0.0
        %251 = vmatprep.subr.mxu0 0.0
        %252 = vmatpush1.xpose.msra.mxu0 0.0
        %253 = vmatprep.subr.mxu0 0.0
        %254 = vmatpush1.xpose.msra.mxu0 0.0
        %255 = vmatprep.subr.mxu0 0.0
        %256 = vmatpush1.xpose.msra.mxu0 0.0
        %257 = vmatprep.subr.mxu0 0.0
        %258 = vmatpush1.xpose.msra.mxu0 0.0
        %259 = vmatprep.subr.mxu0 0.0
        %260 = vmatpush1.xpose.msra.mxu0 0.0
        %261 = vmatprep.subr.mxu0 0.0
        %262 = vmatpush1.xpose.msra.mxu0 0.0
        %263 = vmatprep.subr.mxu0 0.0
        %264 = vmatpush1.xpose.msra.mxu0 0.0
        %265 = vmatprep.subr.mxu0 0.0
        %266 = vmatpush1.xpose.msra.mxu0 0.0
        %267 = vmatprep.subr.mxu0 0.0
        %268 = vmatpush1.xpose.msra.mxu0 0.0
        %269 = vmatprep.subr.mxu0 0.0
        %270 = vmatpush1.xpose.msra.mxu0 0.0
        %271 = vmatprep.subr.mxu0 0.0
        %272 = vmatpush1.xpose.msra.mxu0 0.0
        %273 = vmatprep.subr.mxu0 0.0
        %274 = vmatpush1.xpose.msra.mxu0 0.0
        %275 = vmatprep.subr.mxu0 0.0
        %276 = vmatpush1.xpose.msra.mxu0 0.0
        %277 = vmatprep.subr.mxu0 0.0
        %278 = vmatpush1.xpose.msra.mxu0 0.0
        %279 = vmatprep.subr.mxu0 0.0
        %280 = vmatpush1.xpose.msra.mxu0 0.0
        %281 = vmatprep.subr.mxu0 0.0
        %282 = vmatpush1.xpose.msra.mxu0 0.0
        %283 = vmatprep.subr.mxu0 0.0
        %284 = vmatpush1.xpose.msra.mxu0 0.0
        %285 = vmatprep.subr.mxu0 0.0
        %286 = vmatpush1.xpose.msra.mxu0 0.0
        %287 = vmatprep.subr.mxu0 0.0
        %288 = vmatpush1.xpose.msra.mxu0 0.0
        %289 = vmatprep.subr.mxu0 0.0
        %290 = vmatpush1.xpose.msra.mxu0 0.0
        %291 = vmatprep.subr.mxu0 0.0
        %292 = vmatpush1.xpose.msra.mxu0 0.0
        %293 = vmatprep.subr.mxu0 0.0
        %294 = vmatpush1.xpose.msra.mxu0 0.0
        %295 = vmatprep.subr.mxu0 0.0
        %296 = vmatpush1.xpose.msra.mxu0 0.0
        %297 = vmatprep.subr.mxu0 0.0
        %298 = vmatpush1.xpose.msra.mxu0 0.0
        %299 = vmatprep.subr.mxu0 0.0
        %300 = vmatpush1.xpose.msra.mxu0 0.0
        %301 = vmatprep.subr.mxu0 0.0
        %302 = vmatpush1.xpose.msra.mxu0 0.0
        %303 = vmatprep.subr.mxu0 0.0
        %304 = vmatpush1.xpose.msra.mxu0 0.0
        %305 = vmatprep.subr.mxu0 0.0
        %306 = vmatpush1.xpose.msra.mxu0 0.0
        %307 = vmatprep.mubr.f32.mxu0 %v235
        %308 = vmatmul.mubr.f32.gmra.mrb[0].mxu0 %v234
        %v309 = vpop.f32.mrb[0].mxu0
        %v310 = vadd.f32 0.0, %v309
        %v311 = vpop.f32.mrb[0].mxu0
        %312 = vdwg.mxu0
        %v313 = vadd.f32 %v234, %v235
        %314 = vadd.xlane.f32.xlu0 %v313
        %v315 = vpop.xlane.xlu0 %314
        %316 = vmatprep.subr.mxu0 %v235
        %317 = vmatpush1.xpose.msra.mxu0 %v234
        %318 = vmatprep.subr.mxu0 0.0
        %319 = vmatpush1.xpose.msra.mxu0 0.0
        %320 = vmatprep.subr.mxu0 0.0
        %321 = vmatpush1.xpose.msra.mxu0 0.0
        %322 = vmatprep.subr.mxu0 0.0
        %323 = vmatpush1.xpose.msra.mxu0 0.0
        %324 = vmatprep.subr.mxu0 0.0
        %325 = vmatpush1.xpose.msra.mxu0 0.0
        %326 = vmatprep.subr.mxu0 0.0
        %327 = vmatpush1.xpose.msra.mxu0 0.0
        %328 = vmatprep.subr.mxu0 0.0
        %329 = vmatpush1.xpose.msra.mxu0 0.0
        %330 = vmatprep.subr.mxu0 0.0
        %331 = vmatpush1.xpose.msra.mxu0 0.0
        %332 = vmatprep.subr.mxu0 0.0
        %333 = vmatpush1.xpose.msra.mxu0 0.0
        %334 = vmatprep.subr.mxu0 0.0
        %335 = vmatpush1.xpose.msra.mxu0 0.0
        %336 = vmatprep.subr.mxu0 0.0
        %337 = vmatpush1.xpose.msra.mxu0 0.0
        %338 = vmatprep.subr.mxu0 0.0
        %339 = vmatpush1.xpose.msra.mxu0 0.0
        %340 = vmatprep.subr.mxu0 0.0
        %341 = vmatpush1.xpose.msra.mxu0 0.0
        %342 = vmatprep.subr.mxu0 0.0
        %343 = vmatpush1.xpose.msra.mxu0 0.0
        %344 = vmatprep.subr.mxu0 0.0
        %345 = vmatpush1.xpose.msra.mxu0 0.0
        %346 = vmatprep.subr.mxu0 0.0
        %347 = vmatpush1.xpose.msra.mxu0 0.0
        %348 = vmatprep.subr.mxu0 0.0
        %349 = vmatpush1.xpose.msra.mxu0 0.0
        %350 = vmatprep.subr.mxu0 0.0
        %351 = vmatpush1.xpose.msra.mxu0 0.0
        %352 = vmatprep.subr.mxu0 0.0
        %353 = vmatpush1.xpose.msra.mxu0 0.0
        %354 = vmatprep.subr.mxu0 0.0
        %355 = vmatpush1.xpose.msra.mxu0 0.0
        %356 = vmatprep.subr.mxu0 0.0
        %357 = vmatpush1.xpose.msra.mxu0 0.0
        %358 = vmatprep.subr.mxu0 0.0
        %359 = vmatpush1.xpose.msra.mxu0 0.0
        %360 = vmatprep.subr.mxu0 0.0
        %361 = vmatpush1.xpose.msra.mxu0 0.0
        %362 = vmatprep.subr.mxu0 0.0
        %363 = vmatpush1.xpose.msra.mxu0 0.0
        %364 = vmatprep.subr.mxu0 0.0
        %365 = vmatpush1.xpose.msra.mxu0 0.0
        %366 = vmatprep.subr.mxu0 0.0
        %367 = vmatpush1.xpose.msra.mxu0 0.0
        %368 = vmatprep.subr.mxu0 0.0
        %369 = vmatpush1.xpose.msra.mxu0 0.0
        %370 = vmatprep.subr.mxu0 0.0
        %371 = vmatpush1.xpose.msra.mxu0 0.0
        %372 = vmatprep.subr.mxu0 0.0
        %373 = vmatpush1.xpose.msra.mxu0 0.0
        %374 = vmatprep.subr.mxu0 0.0
        %375 = vmatpush1.xpose.msra.mxu0 0.0
        %376 = vmatprep.subr.mxu0 0.0
        %377 = vmatpush1.xpose.msra.mxu0 0.0
        %378 = vmatprep.subr.mxu0 0.0
        %379 = vmatpush1.xpose.msra.mxu0 0.0
        %380 = vmatprep.mubr.f32.mxu0 1.0
        %381 = vmatmul.mubr.f32.gmra.mrb[0].mxu0 1.0
        %v382 = vpop.f32.mrb[0].mxu0
        %v383 = vadd.f32 0.0, %v382
        %v384 = vpop.f32.mrb[0].mxu0
        %385 = vdwg.mxu0
        %v386 = vmul.f32 %v310, %v242
        %vm387 = vcmask 64512
        %v388 = vsel %vm387, %v386, 0.0
        %389 = vadd.xlane.f32.xlu0 %v388
        %v390 = vpop.xlane.xlu0 %389
        %v391 = vrot.slane %v388, 4
        %v392 = vadd.f32 %v388, %v391
        %v393 = vrot.slane %v392, 2
        %v394 = vadd.f32 %v392, %v393
        %v395 = vrot.slane %v394, 1
        %v396 = vadd.f32 %v394, %v395
        %v397 = vld [vmem:[%s229] sm:$0xff]
        %s398 = scalar_lea.vmem %s229, 16
        %v399 = vld [vmem:[%s398] sm:$0xff]
        %s400 = scalar_lea.vmem %s229, 32
        %v401 = vld [vmem:[%s400] sm:$0xff]
        %s402 = scalar_lea.vmem %s229, 48
        %v403 = vld [vmem:[%s402] sm:$0xff]
        %v404 = vld [vmem:[%s233] sm:$0x1]
        %s405 = scalar_lea.vmem %s233, 2
        %v406 = vld [vmem:[%s405] sm:$0x1]
        %s407 = scalar_lea.vmem %s233, 4
        %v408 = vld [vmem:[%s407] sm:$0x1]
        %s409 = scalar_lea.vmem %s233, 6
        %v410 = vld [vmem:[%s409] sm:$0x1]
        %412 = vset.pattern.permute.xlu0 0
        %413 = vperm.xlu0 %412, %v397
        %v414 = vpop.permute.xlu0 %413
        %v417 = vlaneseq
        %v418 = vshrl.u32 %v417, 7
        %v419 = vsub.s32 0, %v418
        %v420 = vrot.slane %v404, %v419
        %v422 = vmul.f32 %v414, %v420
        %v423 = vmul.f32 %v422, %v310
        %v424 = vmul.f32 %v397, %v315
        %426 = vset.pattern.permute.xlu0 0
        %427 = vperm.xlu0 %426, %v424
        %v428 = vpop.permute.xlu0 %427
        %v431 = vlaneseq
        %v432 = vshrl.u32 %v431, 7
        %v433 = vsub.s32 0, %v432
        %v434 = vrot.slane %v406, %v433
        %v436 = vmul.f32 %v428, %v434
        %v437 = vadd.f32 %v423, %v436
        %v438 = vmul.f32 %v404, %v383
        %440 = vset.pattern.permute.xlu0 0
        %441 = vperm.xlu0 %440, %v399
        %v442 = vpop.permute.xlu0 %441
        %v445 = vlaneseq
        %v446 = vshrl.u32 %v445, 7
        %v447 = vsub.s32 0, %v446
        %v448 = vrot.slane %v438, %v447
        %v450 = vmul.f32 %v442, %v448
        %v451 = vadd.f32 %v437, %v450
        %v452 = vmul.f32 %v399, 256.0
        %454 = vset.pattern.permute.xlu0 0
        %455 = vperm.xlu0 %454, %v452
        %v456 = vpop.permute.xlu0 %455
        %v458 = vmul.f32 %v456, %v434
        %v459 = vadd.f32 %v451, %v458
        %v460 = vmul.f32 %v397, %v397
        %v461 = vmul.f32 %v460, %v390
        %v462 = vmul.f32 %v397, 2.0
        %v463 = vmul.f32 %v462, %v399
        %v464 = vmul.f32 %v463, %v315
        %v465 = vadd.f32 %v461, %v464
        %v466 = vmul.f32 %v399, %v399
        %v467 = vmul.f32 %v466, 256.0
        %v468 = vadd.f32 %v465, %v467
        %v469 = vmul.f32 %v404, %v404
        %v470 = vmul.f32 %v469, %v396
        %v471 = vmul.f32 %v404, 2.0
        %v472 = vmul.f32 %v471, %v406
        %v473 = vmul.f32 %v472, %v383
        %v474 = vadd.f32 %v470, %v473
        %v475 = vmul.f32 %v406, %v406
        %v476 = vmul.f32 %v475, 256.0
        %v477 = vadd.f32 %v474, %v476
        %v478 = vmax.f32 %v468, 1e-24
        %v479 = vrsqrt.pop %v478
        %v480 = vmul.f32 %v403, %v479
        %482 = vset.pattern.permute.xlu0 0
        %483 = vperm.xlu0 %482, %v480
        %v484 = vpop.permute.xlu0 %483
        %v486 = vmul.f32 %v459, %v484
        %v487 = vmax.f32 %v477, 1e-24
        %v488 = vrsqrt.pop %v487
        %v490 = vlaneseq
        %v491 = vshrl.u32 %v490, 7
        %v492 = vsub.s32 0, %v491
        %v493 = vrot.slane %v488, %v492
        %v495 = vmul.f32 %v486, %v493
        %v496 = vsel %vm387, %v495, -inf
        %497 = vmax.xlane.f32.xlu0 %v496
        %v498 = vpop.xlane.xlu0 %497
        %v499 = vsub.f32 %v495, %v498
        %v500 = vmul.f32 %v499, 1.442695
        %v501 = vpow.pop %v500
        %v502 = vsel %vm387, %v501, 0.0
        %503 = vadd.xlane.f32.xlu0 %v502
        %v504 = vpop.xlane.xlu0 %503
        %v505 = vrcp.pop %v504
        %v506 = vmul.f32 %v501, %v505
        %508 = vset.pattern.permute.xlu0 0
        %509 = vperm.xlu0 %508, %v401
        %v510 = vpop.permute.xlu0 %509
        %v512 = vmul.f32 %v510, %v506
        %v514 = vlaneseq
        %v515 = vshrl.u32 %v514, 7
        %v516 = vsub.s32 0, %v515
        %v517 = vrot.slane %v408, %v516
        %v519 = vmul.f32 %v512, %v517
        %v520 = vadd.f32 %v519, 0.0
        %v522 = vlaneseq
        %v523 = vshrl.u32 %v522, 7
        %v524 = vsub.s32 0, %v523
        %v525 = vrot.slane %v410, %v524
        %v527 = vmul.f32 %v512, %v525
        %v528 = vsel %vm387, %v527, 0.0
        %529 = vadd.xlane.f32.xlu0 %v528
        %v530 = vpop.xlane.xlu0 %529
        %v531 = vadd.f32 %v530, 0.0
        %s532 = scalar_lea.vmem %s229, 8
        %v533 = vld [vmem:[%s532] sm:$0xff]
        %s534 = scalar_lea.vmem %s229, 24
        %v535 = vld [vmem:[%s534] sm:$0xff]
        %s536 = scalar_lea.vmem %s229, 40
        %v537 = vld [vmem:[%s536] sm:$0xff]
        %s538 = scalar_lea.vmem %s229, 56
        %v539 = vld [vmem:[%s538] sm:$0xff]
        %s540 = scalar_lea.vmem %s233, 1
        %v541 = vld [vmem:[%s540] sm:$0x1]
        %s542 = scalar_lea.vmem %s233, 3
        %v543 = vld [vmem:[%s542] sm:$0x1]
        %s544 = scalar_lea.vmem %s233, 5
        %v545 = vld [vmem:[%s544] sm:$0x1]
        %s546 = scalar_lea.vmem %s233, 7
        %v547 = vld [vmem:[%s546] sm:$0x1]
        %549 = vset.pattern.permute.xlu0 0
        %550 = vperm.xlu0 %549, %v533
        %v551 = vpop.permute.xlu0 %550
        %v554 = vlaneseq
        %v555 = vshrl.u32 %v554, 7
        %v556 = vsub.s32 0, %v555
        %v557 = vrot.slane %v541, %v556
        %v559 = vmul.f32 %v551, %v557
        %v560 = vmul.f32 %v559, %v310
        %v561 = vmul.f32 %v533, %v315
        %563 = vset.pattern.permute.xlu0 0
        %564 = vperm.xlu0 %563, %v561
        %v565 = vpop.permute.xlu0 %564
        %v568 = vlaneseq
        %v569 = vshrl.u32 %v568, 7
        %v570 = vsub.s32 0, %v569
        %v571 = vrot.slane %v543, %v570
        %v573 = vmul.f32 %v565, %v571
        %v574 = vadd.f32 %v560, %v573
        %v575 = vmul.f32 %v541, %v383
        %577 = vset.pattern.permute.xlu0 0
        %578 = vperm.xlu0 %577, %v535
        %v579 = vpop.permute.xlu0 %578
        %v582 = vlaneseq
        %v583 = vshrl.u32 %v582, 7
        %v584 = vsub.s32 0, %v583
        %v585 = vrot.slane %v575, %v584
        %v587 = vmul.f32 %v579, %v585
        %v588 = vadd.f32 %v574, %v587
        %v589 = vmul.f32 %v535, 256.0
        %591 = vset.pattern.permute.xlu0 0
        %592 = vperm.xlu0 %591, %v589
        %v593 = vpop.permute.xlu0 %592
        %v595 = vmul.f32 %v593, %v571
        %v596 = vadd.f32 %v588, %v595
        %v597 = vmul.f32 %v533, %v533
        %v598 = vmul.f32 %v597, %v390
        %v599 = vmul.f32 %v533, 2.0
        %v600 = vmul.f32 %v599, %v535
        %v601 = vmul.f32 %v600, %v315
        %v602 = vadd.f32 %v598, %v601
        %v603 = vmul.f32 %v535, %v535
        %v604 = vmul.f32 %v603, 256.0
        %v605 = vadd.f32 %v602, %v604
        %v606 = vmul.f32 %v541, %v541
        %v607 = vmul.f32 %v606, %v396
        %v608 = vmul.f32 %v541, 2.0
        %v609 = vmul.f32 %v608, %v543
        %v610 = vmul.f32 %v609, %v383
        %v611 = vadd.f32 %v607, %v610
        %v612 = vmul.f32 %v543, %v543
        %v613 = vmul.f32 %v612, 256.0
        %v614 = vadd.f32 %v611, %v613
        %v615 = vmax.f32 %v605, 1e-24
        %v616 = vrsqrt.pop %v615
        %v617 = vmul.f32 %v539, %v616
        %619 = vset.pattern.permute.xlu0 0
        %620 = vperm.xlu0 %619, %v617
        %v621 = vpop.permute.xlu0 %620
        %v623 = vmul.f32 %v596, %v621
        %v624 = vmax.f32 %v614, 1e-24
        %v625 = vrsqrt.pop %v624
        %v627 = vlaneseq
        %v628 = vshrl.u32 %v627, 7
        %v629 = vsub.s32 0, %v628
        %v630 = vrot.slane %v625, %v629
        %v632 = vmul.f32 %v623, %v630
        %v633 = vsel %vm387, %v632, -inf
        %634 = vmax.xlane.f32.xlu0 %v633
        %v635 = vpop.xlane.xlu0 %634
        %v636 = vsub.f32 %v632, %v635
        %v637 = vmul.f32 %v636, 1.442695
        %v638 = vpow.pop %v637
        %v639 = vsel %vm387, %v638, 0.0
        %640 = vadd.xlane.f32.xlu0 %v639
        %v641 = vpop.xlane.xlu0 %640
        %v642 = vrcp.pop %v641
        %v643 = vmul.f32 %v638, %v642
        %645 = vset.pattern.permute.xlu0 0
        %646 = vperm.xlu0 %645, %v537
        %v647 = vpop.permute.xlu0 %646
        %v649 = vmul.f32 %v647, %v643
        %v651 = vlaneseq
        %v652 = vshrl.u32 %v651, 7
        %v653 = vsub.s32 0, %v652
        %v654 = vrot.slane %v545, %v653
        %v656 = vmul.f32 %v649, %v654
        %v657 = vadd.f32 %v520, %v656
        %v659 = vlaneseq
        %v660 = vshrl.u32 %v659, 7
        %v661 = vsub.s32 0, %v660
        %v662 = vrot.slane %v547, %v661
        %v664 = vmul.f32 %v649, %v662
        %v665 = vsel %vm387, %v664, 0.0
        %666 = vadd.xlane.f32.xlu0 %v665
        %v667 = vpop.xlane.xlu0 %666
        %v668 = vadd.f32 %v531, %v667
        %s669 = scalar_lea.vmem %s229, 64
        %v670 = vld [vmem:[%s669] sm:$0xff]
        %v671 = vadd.f32 %v668, %v670
        %673 = vset.pattern.permute.xlu0 0
        %674 = vperm.xlu0 %673, %v671
        %v675 = vpop.permute.xlu0 %674
        %v678 = vsel %vm387, %v657, 0
        %680 = vmatprep.subr.mxu0 %v235
        %681 = vmatpush1.msra.mxu0 %v234
        %682 = vmatprep.subr.mxu0 0.0
        %683 = vmatpush1.msra.mxu0 0.0
        %684 = vmatprep.subr.mxu0 0.0
        %685 = vmatpush1.msra.mxu0 0.0
        %686 = vmatprep.subr.mxu0 0.0
        %687 = vmatpush1.msra.mxu0 0.0
        %688 = vmatprep.subr.mxu0 0.0
        %689 = vmatpush1.msra.mxu0 0.0
        %690 = vmatprep.subr.mxu0 0.0
        %691 = vmatpush1.msra.mxu0 0.0
        %692 = vmatprep.subr.mxu0 0.0
        %693 = vmatpush1.msra.mxu0 0.0
        %694 = vmatprep.subr.mxu0 0.0
        %695 = vmatpush1.msra.mxu0 0.0
        %696 = vmatprep.subr.mxu0 0.0
        %697 = vmatpush1.msra.mxu0 0.0
        %698 = vmatprep.subr.mxu0 0.0
        %699 = vmatpush1.msra.mxu0 0.0
        %700 = vmatprep.subr.mxu0 0.0
        %701 = vmatpush1.msra.mxu0 0.0
        %702 = vmatprep.subr.mxu0 0.0
        %703 = vmatpush1.msra.mxu0 0.0
        %704 = vmatprep.subr.mxu0 0.0
        %705 = vmatpush1.msra.mxu0 0.0
        %706 = vmatprep.subr.mxu0 0.0
        %707 = vmatpush1.msra.mxu0 0.0
        %708 = vmatprep.subr.mxu0 0.0
        %709 = vmatpush1.msra.mxu0 0.0
        %710 = vmatprep.subr.mxu0 0.0
        %711 = vmatpush1.msra.mxu0 0.0
        %712 = vmatprep.subr.mxu0 0.0
        %713 = vmatpush1.msra.mxu0 0.0
        %714 = vmatprep.subr.mxu0 0.0
        %715 = vmatpush1.msra.mxu0 0.0
        %716 = vmatprep.subr.mxu0 0.0
        %717 = vmatpush1.msra.mxu0 0.0
        %718 = vmatprep.subr.mxu0 0.0
        %719 = vmatpush1.msra.mxu0 0.0
        %720 = vmatprep.subr.mxu0 0.0
        %721 = vmatpush1.msra.mxu0 0.0
        %722 = vmatprep.subr.mxu0 0.0
        %723 = vmatpush1.msra.mxu0 0.0
        %724 = vmatprep.subr.mxu0 0.0
        %725 = vmatpush1.msra.mxu0 0.0
        %726 = vmatprep.subr.mxu0 0.0
        %727 = vmatpush1.msra.mxu0 0.0
        %728 = vmatprep.subr.mxu0 0.0
        %729 = vmatpush1.msra.mxu0 0.0
        %730 = vmatprep.subr.mxu0 0.0
        %731 = vmatpush1.msra.mxu0 0.0
        %732 = vmatprep.subr.mxu0 0.0
        %733 = vmatpush1.msra.mxu0 0.0
        %734 = vmatprep.subr.mxu0 0.0
        %735 = vmatpush1.msra.mxu0 0.0
        %736 = vmatprep.subr.mxu0 0.0
        %737 = vmatpush1.msra.mxu0 0.0
        %738 = vmatprep.subr.mxu0 0.0
        %739 = vmatpush1.msra.mxu0 0.0
        %740 = vmatprep.subr.mxu0 0.0
        %741 = vmatpush1.msra.mxu0 0.0
        %742 = vmatprep.subr.mxu0 0.0
        %743 = vmatpush1.msra.mxu0 0.0
        %744 = vmatprep.mubr.f32.mxu0 0.0
        %745 = vmatmul.mubr.f32.gmra.mrb[0].mxu0 %v678
        %v746 = vpop.f32.mrb[0].mxu0
        %v747 = vadd.f32 %v675, %v746
        %v748 = vpop.f32.mrb[0].mxu0
        %v749 = vadd.f32 %v675, %v748
        %750 = vdwg.mxu0
        %751 = vst [vmem:[%s215] sm:$0xff] %v747
        %752 = vst [vmem:[%s215 + $0x8] sm:$0xff] %v749
        %s753 = sand.u32 %s119, 1
        %s754 = scalar_lea.sflag [#allocation3], %s753
        %s755 = sand.u32 %s119, 1
        %s756 = smul.addr %s755, 16
        %s757 = scalar_lea.vmem [#allocation2], %s756
        // Predicated region
        $region33: #{tpu_custom_call.1} parent=31 // pred_check
          %p758 = pneg %p129
        $region34: #{tpu_custom_call.1} parent=31 // pred_check_branch
          %760 = sbr.rel (%p758) target = $region36
        $region35: #{tpu_custom_call.1} parent=31 // pred_region
          %s762 = ssub.s32 256, 256
          %763 = vsyncadd %s754, %s762
          %s764 = smul.addr %s22, 2
          %s765 = smul.addr %s21, 8
          %s766 = sadd.s32 %s764, %s765
          %s767 = smul.addr %s766, 128
          %s768 = scalar_lea.hbm %s3, %s767
          %s770 = sshll.u32 %s757, 4
          %s771 = int_to_ptr.vmem [resolvable:$true] %s770
          %773 = dma.vmem_to_hbm [thread:$0]  %s771, 256, %s768, %s754
        $region36: #{tpu_custom_call.1} parent=31 // pred_fallthru
          _
      $region32: #{tpu_custom_call.1} parent=5 // pred_fallthru
        _
      %p774 = scmp.le.s32.totalorder 2, %s12
      // Predicated region
      $region37: #{tpu_custom_call.1} parent=5 // pred_check
        %p775 = pneg %p774
      $region38: #{tpu_custom_call.1} parent=5 // pred_check_branch
        %777 = sbr.rel (%p775) target = $region40
      $region39: #{tpu_custom_call.1} parent=5 // pred_region
        %s778 = ssub.s32 %s12, 2
        // Predicated region
        $region41: #{tpu_custom_call.1} parent=39 // pred_check
          %p779 = pneg %p135
        $region42: #{tpu_custom_call.1} parent=39 // pred_check_branch
          %781 = sbr.rel (%p779) target = $region44
        $region43: #{tpu_custom_call.1} parent=39 // pred_region
          %s782 = sand.u32 %s120, 1
          %s783 = scalar_lea.sflag [#allocation3], %s782
          %s784 = sand.u32 %s120, 1
          %s785 = smul.addr %s784, 16
          %s786 = scalar_lea.vmem [#allocation2], %s785
          %787 = dma.done %s783, 256
        $region44: #{tpu_custom_call.1} parent=39 // pred_fallthru
          _
      $region40: #{tpu_custom_call.1} parent=5 // pred_fallthru
        _
    $region6: #{tpu_custom_call.1} parent=1 // loop_footer
      %s16 = sadd.s32 1, %s12
    $region7: #{tpu_custom_call.1} parent=1 // loop_footer_branch
      %11 = sbr.rel target = $region3
    $region8: #{tpu_custom_call.1} parent=1 // loop_exit
      _
    %788 = vsyncpa [#allocation3], 1
    %s789 = scalar_lea.sflag [#allocation3], 1
    %790 = vsyncpa %s789, 1

</llo_original>
